<compile_context>
chip_gen: v7x
topology: tpu7x:2x2x1
jax: 0.10.0
libtpu: 0.0.40
codegen_flags: <defaults>
</compile_context>

<pallas_src>
import jax
import jax.numpy as jnp
from jax.experimental import pallas as pl
from jax.experimental.pallas import tpu as pltpu


def _round_up(x, m):
    return (x + m - 1) // m * m


def ffn_kernel(x_ref, w1_ref, b1_ref, w2_ref, b2_ref, o_ref, acc_ref):
    k = pl.program_id(1)

    @pl.when(k == 0)
    def _init():
        acc_ref[...] = jnp.zeros_like(acc_ref)

    # First matmul (MXU), f32 accumulation; bias + ReLU in f32 on the VPU.
    h = jnp.dot(x_ref[...], w1_ref[...], preferred_element_type=jnp.float32)
    h = jnp.maximum(h + b1_ref[...], 0.0)

    # Second matmul: accumulate this hidden-tile's contribution.
    acc_ref[...] += jnp.dot(h.astype(w2_ref.dtype), w2_ref[...],
                            preferred_element_type=jnp.float32)

    @pl.when(k == pl.num_programs(1) - 1)
    def _finalize():
        o_ref[...] = (acc_ref[...] + b2_ref[...].astype(jnp.float32)).astype(o_ref.dtype)


def feed_forward(x, w1, b1, w2, b2, *, batch_tile=None, hidden_tile=None):
    """x: [B, in]; w1: [in, H]; b1: [H]; w2: [H, C]; b2: [C]  ->  [B, C]."""
    B, in_size = x.shape
    H = w1.shape[1]
    C = w2.shape[1]
    itemsize = jnp.dtype(x.dtype).itemsize

    # --- tiling choices -----------------------------------------------------
    if hidden_tile is None:
        hidden_tile = min(_round_up(H, 128), 512)          # 128-mult (MXU friendly)
    if batch_tile is None:
        batch_tile = min(_round_up(B, 8), 512)              # sublane-aligned rows
    H_pad = _round_up(H, hidden_tile)
    B_pad = _round_up(B, batch_tile)
    C_pad = _round_up(C, 128)                                # lane-dense output

    bt, ht = batch_tile, hidden_tile
    n_bt, n_ht = B_pad // bt, H_pad // ht

    # --- zero-pad operands (padding is mathematically inert) ----------------
    x_p = jnp.pad(x, ((0, B_pad - B), (0, 0)))
    w1_p = jnp.pad(w1, ((0, 0), (0, H_pad - H)))
    b1_p = jnp.pad(b1, (0, H_pad - H)).reshape(1, H_pad)
    w2_p = jnp.pad(w2, ((0, H_pad - H), (0, C_pad - C)))
    b2_p = jnp.pad(b2, (0, C_pad - C)).reshape(1, C_pad)

    # --- VMEM budget (double-buffered streams + accumulator + headroom) -----
    stream_bytes = 2 * itemsize * (bt * in_size + in_size * ht + ht
                                   + ht * C_pad + C_pad + bt * C_pad)
    body_bytes = 4 * (bt * C_pad + bt * ht)                  # acc scratch + h temp
    vmem_limit = min(max(2 * (stream_bytes + body_bytes), 32 * 1024 * 1024),
                     64 * 1024 * 1024)                       # never exceed v7x VMEM

    cost = pl.CostEstimate(
        flops=2 * B_pad * (in_size * H_pad + H_pad * C_pad),
        transcendentals=0,
        bytes_accessed=itemsize * (B_pad * in_size
                                   + n_bt * (in_size * H_pad + H_pad * C_pad
                                             + H_pad + C_pad)
                                   + B_pad * C_pad),
    )

    out = pl.pallas_call(
        ffn_kernel,
        out_shape=jax.ShapeDtypeStruct((B_pad, C_pad), x.dtype),
        grid_spec=pltpu.PrefetchScalarGridSpec(
            num_scalar_prefetch=0,
            grid=(n_bt, n_ht),
            in_specs=[
                pl.BlockSpec((bt, in_size), lambda i, k: (i, 0)),    # x tile
                pl.BlockSpec((in_size, ht), lambda i, k: (0, k)),    # W1 tile
                pl.BlockSpec((1, ht), lambda i, k: (0, k)),          # b1 tile
                pl.BlockSpec((ht, C_pad), lambda i, k: (k, 0)),      # W2 tile
                pl.BlockSpec((1, C_pad), lambda i, k: (0, 0)),       # b2
            ],
            out_specs=pl.BlockSpec((bt, C_pad), lambda i, k: (i, 0)),
            scratch_shapes=[pltpu.VMEM((bt, C_pad), jnp.float32)],
        ),
        compiler_params=pltpu.CompilerParams(
            dimension_semantics=("parallel", "arbitrary"),
            vmem_limit_bytes=vmem_limit,
        ),
        cost_estimate=cost,
    )(x_p, w1_p, b1_p, w2_p, b2_p)

    return out[:B, :C]


def init_params(key, input_size, hidden_size, num_classes=2, dtype=jnp.float32):
    """Deterministic init mimicking nn.Linear default (U(-1/sqrt(fan_in), +))."""
    k1, k2, k3, k4 = jax.random.split(key, 4)
    bound1 = 1.0 / jnp.sqrt(input_size)
    bound2 = 1.0 / jnp.sqrt(hidden_size)
    # Stored directly in [in, out] layout (already transposed vs PyTorch).
    w1 = jax.random.uniform(k1, (input_size, hidden_size), dtype, -bound1, bound1)
    b1 = jax.random.uniform(k2, (hidden_size,), dtype, -bound1, bound1)
    w2 = jax.random.uniform(k3, (hidden_size, num_classes), dtype, -bound2, bound2)
    b2 = jax.random.uniform(k4, (num_classes,), dtype, -bound2, bound2)
    return w1, b1, w2, b2


if __name__ == "__main__":
    key = jax.random.PRNGKey(0)
    batch, input_size, hidden_size, num_classes = 16, 16, 256, 2

    kx, kp = jax.random.split(key)
    x = jax.random.normal(kx, (batch, input_size), jnp.float32)
    w1, b1, w2, b2 = init_params(kp, input_size, hidden_size, num_classes)

    ref = jnp.maximum(x @ w1 + b1, 0.0) @ w2 + b2

    # Explicit small tiles: exercises the 2x2 grid (batch-parallel x hidden-accum).
    y = feed_forward(x, w1, b1, w2, b2, batch_tile=8, hidden_tile=128)
    y = jax.block_until_ready(y)
    assert y.shape == (batch, num_classes)
    assert jnp.allclose(y, ref, atol=1e-5, rtol=1e-5), "mismatch vs reference (tiled)"

    # Auto-tiling path (defaults pick aligned, padded tiles).
    y2 = jax.block_until_ready(feed_forward(x, w1, b1, w2, b2))
    assert jnp.allclose(y2, ref, atol=1e-5, rtol=1e-5), "mismatch vs reference (auto)"

    print("KERNEL_OK")
</pallas_src>

<mosaic_0001>
module attributes {stable_mosaic.version = 11 : i64} {
  func.func @ffn_kernel(%arg0: i32, %arg1: i32, %arg2: memref<8x16xf32, #tpu.memory_space<vmem>>, %arg3: memref<16x128xf32, #tpu.memory_space<vmem>>, %arg4: memref<1x128xf32, #tpu.memory_space<vmem>>, %arg5: memref<128x128xf32, #tpu.memory_space<vmem>>, %arg6: memref<1x128xf32, #tpu.memory_space<vmem>>, %arg7: memref<8x128xf32, #tpu.memory_space<vmem>>, %arg8: memref<8x128xf32, #tpu.memory_space<vmem>>) attributes {dimension_semantics = [#tpu.dimension_semantics<parallel>, #tpu.dimension_semantics<arbitrary>], iteration_bounds = array<i64: 2, 2>, scalar_prefetch = 0 : i64, scratch_operands = 1 : i64, tpu.core_type = #tpu.core_type<tc>, window_params = [{transform_indices = @transform_0, window_bounds = array<i64: 8, 16>}, {transform_indices = @transform_1, window_bounds = array<i64: 16, 128>}, {transform_indices = @transform_2, window_bounds = array<i64: 1, 128>}, {transform_indices = @transform_3, window_bounds = array<i64: 128, 128>}, {pipeline_mode = #tpu.pipeline_mode<synchronous>, transform_indices = @transform_4, window_bounds = array<i64: 1, 128>}, {transform_indices = @transform_5, window_bounds = array<i64: 8, 128>}]} {
    %c0_i32 = arith.constant 0 : i32
    %0 = arith.cmpi eq, %arg1, %c0_i32 : i32
    %1 = arith.extui %0 : i1 to i32
    %c0_i32_0 = arith.constant 0 : i32
    %2 = arith.cmpi ne, %1, %c0_i32_0 : i32
    scf.if %2 {
      %cst_15 = arith.constant 0.000000e+00 : f32
      %19 = vector.broadcast %cst_15 : f32 to vector<8x128xf32>
      %c0_16 = arith.constant 0 : index
      %c0_17 = arith.constant 0 : index
      %20 = vector.load %arg8[%c0_16, %c0_17] : memref<8x128xf32, #tpu.memory_space<vmem>>, vector<8x128xf32>
      tpu.vector_store %arg8[%c0_16, %c0_17], %19 {strides = array<i32>} : memref<8x128xf32, #tpu.memory_space<vmem>>, vector<8x128xf32>,
    } else {
    }
    %c0 = arith.constant 0 : index
    %c0_1 = arith.constant 0 : index
    %3 = vector.load %arg2[%c0, %c0_1] : memref<8x16xf32, #tpu.memory_space<vmem>>, vector<8x16xf32>
    %c0_2 = arith.constant 0 : index
    %c0_3 = arith.constant 0 : index
    %4 = vector.load %arg3[%c0_2, %c0_3] : memref<16x128xf32, #tpu.memory_space<vmem>>, vector<16x128xf32>
    %cst = arith.constant dense<0.000000e+00> : vector<8x128xf32>
    %5 = tpu.matmul %3, %4, %cst {dimension_numbers = #tpu.dot_dimension_numbers<[1], [0], [0], [1], [0, 0, 1, 1], [], []>} : vector<8x16xf32>, vector<16x128xf32>, vector<8x128xf32> -> vector<8x128xf32>
    %c0_4 = arith.constant 0 : index
    %c0_5 = arith.constant 0 : index
    %6 = vector.load %arg4[%c0_4, %c0_5] : memref<1x128xf32, #tpu.memory_space<vmem>>, vector<1x128xf32>
    %7 = vector.broadcast %6 : vector<1x128xf32> to vector<8x128xf32>
    %8 = arith.addf %5, %7 : vector<8x128xf32>
    %cst_6 = arith.constant 0.000000e+00 : f32
    %9 = vector.broadcast %cst_6 : f32 to vector<8x128xf32>
    %10 = arith.maximumf %8, %9 : vector<8x128xf32>
    %c0_7 = arith.constant 0 : index
    %c0_8 = arith.constant 0 : index
    %11 = vector.load %arg8[%c0_7, %c0_8] : memref<8x128xf32, #tpu.memory_space<vmem>>, vector<8x128xf32>
    %c0_9 = arith.constant 0 : index
    %c0_10 = arith.constant 0 : index
    %12 = vector.load %arg5[%c0_9, %c0_10] : memref<128x128xf32, #tpu.memory_space<vmem>>, vector<128x128xf32>
    %cst_11 = arith.constant dense<0.000000e+00> : vector<8x128xf32>
    %13 = tpu.matmul %10, %12, %cst_11 {dimension_numbers = #tpu.dot_dimension_numbers<[1], [0], [0], [1], [0, 0, 1, 1], [], []>} : vector<8x128xf32>, vector<128x128xf32>, vector<8x128xf32> -> vector<8x128xf32>
    %14 = arith.addf %11, %13 : vector<8x128xf32>
    %c0_12 = arith.constant 0 : index
    %c0_13 = arith.constant 0 : index
    %15 = vector.load %arg8[%c0_12, %c0_13] : memref<8x128xf32, #tpu.memory_space<vmem>>, vector<8x128xf32>
    tpu.vector_store %arg8[%c0_12, %c0_13], %14 {strides = array<i32>} : memref<8x128xf32, #tpu.memory_space<vmem>>, vector<8x128xf32>,
    %c1_i32 = arith.constant 1 : i32
    %16 = arith.cmpi eq, %arg1, %c1_i32 : i32
    %17 = arith.extui %16 : i1 to i32
    %c0_i32_14 = arith.constant 0 : i32
    %18 = arith.cmpi ne, %17, %c0_i32_14 : i32
    scf.if %18 {
      %c0_15 = arith.constant 0 : index
      %c0_16 = arith.constant 0 : index
      %19 = vector.load %arg8[%c0_15, %c0_16] : memref<8x128xf32, #tpu.memory_space<vmem>>, vector<8x128xf32>
      %c0_17 = arith.constant 0 : index
      %c0_18 = arith.constant 0 : index
      %20 = vector.load %arg6[%c0_17, %c0_18] : memref<1x128xf32, #tpu.memory_space<vmem>>, vector<1x128xf32>
      %21 = vector.broadcast %20 : vector<1x128xf32> to vector<8x128xf32>
      %22 = arith.addf %19, %21 : vector<8x128xf32>
      %c0_19 = arith.constant 0 : index
      %c0_20 = arith.constant 0 : index
      %23 = vector.load %arg7[%c0_19, %c0_20] : memref<8x128xf32, #tpu.memory_space<vmem>>, vector<8x128xf32>
      tpu.vector_store %arg7[%c0_19, %c0_20], %22 {strides = array<i32>} : memref<8x128xf32, #tpu.memory_space<vmem>>, vector<8x128xf32>,
    } else {
    }
    return
  }
  func.func @transform_0(%arg0: i32, %arg1: i32) -> (i32, i32) {
    %c0_i32 = arith.constant 0 : i32
    %c0_i32_0 = arith.constant 0 : i32
    return %arg0, %c0_i32 : i32, i32
  }
  func.func @transform_1(%arg0: i32, %arg1: i32) -> (i32, i32) {
    %c0_i32 = arith.constant 0 : i32
    %c0_i32_0 = arith.constant 0 : i32
    return %c0_i32, %arg1 : i32, i32
  }
  func.func @transform_2(%arg0: i32, %arg1: i32) -> (i32, i32) {
    %c0_i32 = arith.constant 0 : i32
    %c0_i32_0 = arith.constant 0 : i32
    return %c0_i32, %arg1 : i32, i32
  }
  func.func @transform_3(%arg0: i32, %arg1: i32) -> (i32, i32) {
    %c0_i32 = arith.constant 0 : i32
    %c0_i32_0 = arith.constant 0 : i32
    return %arg1, %c0_i32 : i32, i32
  }
  func.func @transform_4(%arg0: i32, %arg1: i32) -> (i32, i32) {
    %c0_i32 = arith.constant 0 : i32
    %c0_i32_0 = arith.constant 0 : i32
    %c0_i32_1 = arith.constant 0 : i32
    return %c0_i32, %c0_i32_0 : i32, i32
  }
  func.func @transform_5(%arg0: i32, %arg1: i32) -> (i32, i32) {
    %c0_i32 = arith.constant 0 : i32
    %c0_i32_0 = arith.constant 0 : i32
    return %arg0, %c0_i32 : i32, i32
  }
}

</mosaic_0001>

<llo_original>
// kernel: tpu_custom_call.1
$region0: #{tpu_custom_call.1}
  #allocation0 [shape = 'u32[]', space=smem, size = 0x4, offset = 0x4, fixed_abs, tag = 'smem constant byte address 0x4 - core index']
  #allocation1 [shape = 'u32[144,128]{1,0:T(1,128)}', space=vmem, size = 0x12000, scoped, tag = 'internal scratch']
  #allocation2 [shape = 'f32[8,128]{1,0:T(8,128)}', space=vmem, size = 0x1000, scoped, tag = 'scratch operand']
  %s0 = inlined_call_operand.hbm [shape: f32[16,16], index: 0, kind: input, shape index: {}]
  %s1 = inlined_call_operand.hbm [shape: f32[16,256], index: 1, kind: input, shape index: {}]
  %s2 = inlined_call_operand.vmem [shape: f32[1,256], index: 2, kind: input, shape index: {}]
  %s3 = inlined_call_operand.hbm [shape: f32[256,128], index: 3, kind: input, shape index: {}]
  %s4 = inlined_call_operand.vmem [shape: f32[1,128], index: 4, kind: input, shape index: {}]
  %s5 = inlined_call_operand.hbm [shape: f32[16,128], index: 5, kind: output, shape index: {}]
  %s6 = sld [smem:[#allocation0]]
  $region73: #{tpu_custom_call.1} parent=0
    _
  %s8 = ssub.s32 1, %s6
  %s9 = scalar_select 0, %s8, %s6
  $region1: #{tpu_custom_call.1} parent=0
    #allocation3 [shape = 'u8[8192]{0}', space=vmem, size = 0x2000, scoped, tag = 'input window, operand 0']
    #allocation4 [shape = 's32[2]{0}', space=sflag, size = 0x8, scoped, tag = 'scoped memory for tpu_custom_call.1']
    #allocation5 [shape = 's32[2]{0}', space=sflag, size = 0x8, scoped, tag = 'scoped memory for tpu_custom_call.1']
    #allocation6 [shape = 'u8[16384]{0}', space=vmem, size = 0x4000, scoped, tag = 'input window, operand 1']
    #allocation7 [shape = 's32[2]{0}', space=sflag, size = 0x8, scoped, tag = 'scoped memory for tpu_custom_call.1']
    #allocation8 [shape = 'u8[131072]{0}', space=vmem, size = 0x20000, scoped, tag = 'input window, operand 3']
    #allocation9 [shape = 'u8[8192]{0}', space=vmem, size = 0x2000, scoped, tag = 'output window, operand 0']
    %10 = vsyncpa [#allocation4], 0
    %s11 = scalar_lea.sflag [#allocation4], 1
    %12 = vsyncpa %s11, 0
    %13 = vsyncpa [#allocation7], 0
    %s14 = scalar_lea.sflag [#allocation7], 1
    %15 = vsyncpa %s14, 0
    %16 = vsyncpa [#allocation5], 0
    %s17 = scalar_lea.sflag [#allocation5], 1
    %18 = vsyncpa %s17, 0
    loop: start=0, step=1, limit=6
    $region2: #{tpu_custom_call.1} parent=1 // loop_pre_header
      _
    $region3: #{tpu_custom_call.1} parent=1 // loop_header
      %s20 = sphi 0, %s24
      %p21 = scmp.ge.s32.totalorder %s20, 6
      %s27 = sphi 0, %s39
      %s28 = sphi 0, %s35
      %s29 = sphi 0, %s27
      %s30 = sphi 0, %s28
      %s31 = sphi 0, %s29
      %s32 = sphi 0, %s30
      %s42 = sphi 0, %s44
      %s45 = sphi 0, %s42
      %s46 = sphi 0, %s45
      %s62 = sphi 0, %s46
      %s68 = sphi 0, %s70
      %s71 = sphi 0, %s68
      %s72 = sphi 0, %s71
      %s88 = sphi 0, %s72
      %s94 = sphi 0, %s96
      %s97 = sphi 0, %s94
      %s98 = sphi 0, %s97
      %s114 = sphi 0, %s98
      %s120 = sphi 0, %s122
      %s123 = sphi 0, %s120
      %s124 = sphi 0, %s123
      %s140 = sphi 0, %s124
      %s144 = sphi 0, %s144
      %s146 = sphi 0, %s144
      %s147 = sphi 0, %s146
      %s161 = sphi 0, %s147
      %s167 = sphi 0, %s169
      %s170 = sphi 0, %s167
      %s171 = sphi 0, %s170
      %s187 = sphi 0, %s171
    $region4: #{tpu_custom_call.1} parent=1 // loop_header_branch
      %23 = sbr.rel (%p21) target = $region8
    $region5: #{tpu_custom_call.1} parent=1 // loop_body
      %s25 = ssub.s32 %s20, 1
      %s26 = ssub.s32 %s20, 2
      %s33 = sadd.s32 1, %s28
      %p34 = scmp.ge.s32.totalorder %s33, 2
      %s35 = scalar_select %p34, 0, %s33
      %s36 = sadd.s32 1, %s27
      %s37 = scalar_select %p34, %s36, %s27
      %p38 = scmp.ge.s32.totalorder %s37, 2
      %s39 = scalar_select %p38, 0, %s37
      %s40 = ssub.s32 %s27, %s39
      %p41 = scmp.eq.s32.totalorder %s40, 0
      %s43 = sadd.s32 %s42, 1
      %s44 = scalar_select %p41, %s42, %s43
      %p47 = pneg %p41
      %p48 = scmp.eq.s32.totalorder %s20, 3
      %p49 = por %p47, %p48
      %p50 = scmp.ne.s32.totalorder %s42, %s45
      %p51 = scmp.eq.s32.totalorder %s20, 0
      %p52 = por %p50, %p51
      %p53 = scmp.ne.s32.totalorder %s42, %s45
      %p54 = scmp.eq.s32.totalorder %s25, 3
      %p55 = por %p53, %p54
      %p56 = scmp.ne.s32.totalorder %s45, %s46
      %p57 = scmp.eq.s32.totalorder %s25, 0
      %p58 = por %p56, %p57
      %p59 = scmp.ne.s32.totalorder %s45, %s46
      %p60 = scmp.eq.s32.totalorder %s26, 3
      %p61 = por %p59, %p60
      %p63 = scmp.ne.s32.totalorder %s46, %s62
      %p64 = scmp.eq.s32.totalorder %s26, 0
      %p65 = por %p63, %p64
      %s66 = ssub.s32 %s28, %s35
      %p67 = scmp.eq.s32.totalorder %s66, 0
      %s69 = sadd.s32 %s68, 1
      %s70 = scalar_select %p67, %s68, %s69
      %p73 = pneg %p67
      %p74 = scmp.eq.s32.totalorder %s20, 3
      %p75 = por %p73, %p74
      %p76 = scmp.ne.s32.totalorder %s68, %s71
      %p77 = scmp.eq.s32.totalorder %s20, 0
      %p78 = por %p76, %p77
      %p79 = scmp.ne.s32.totalorder %s68, %s71
      %p80 = scmp.eq.s32.totalorder %s25, 3
      %p81 = por %p79, %p80
      %p82 = scmp.ne.s32.totalorder %s71, %s72
      %p83 = scmp.eq.s32.totalorder %s25, 0
      %p84 = por %p82, %p83
      %p85 = scmp.ne.s32.totalorder %s71, %s72
      %p86 = scmp.eq.s32.totalorder %s26, 3
      %p87 = por %p85, %p86
      %p89 = scmp.ne.s32.totalorder %s72, %s88
      %p90 = scmp.eq.s32.totalorder %s26, 0
      %p91 = por %p89, %p90
      %s92 = ssub.s32 %s28, %s35
      %p93 = scmp.eq.s32.totalorder %s92, 0
      %s95 = sadd.s32 %s94, 1
      %s96 = scalar_select %p93, %s94, %s95
      %p99 = pneg %p93
      %p100 = scmp.eq.s32.totalorder %s20, 3
      %p101 = por %p99, %p100
      %p102 = scmp.ne.s32.totalorder %s94, %s97
      %p103 = scmp.eq.s32.totalorder %s20, 0
      %p104 = por %p102, %p103
      %p105 = scmp.ne.s32.totalorder %s94, %s97
      %p106 = scmp.eq.s32.totalorder %s25, 3
      %p107 = por %p105, %p106
      %p108 = scmp.ne.s32.totalorder %s97, %s98
      %p109 = scmp.eq.s32.totalorder %s25, 0
      %p110 = por %p108, %p109
      %p111 = scmp.ne.s32.totalorder %s97, %s98
      %p112 = scmp.eq.s32.totalorder %s26, 3
      %p113 = por %p111, %p112
      %p115 = scmp.ne.s32.totalorder %s98, %s114
      %p116 = scmp.eq.s32.totalorder %s26, 0
      %p117 = por %p115, %p116
      %s118 = ssub.s32 %s28, %s35
      %p119 = scmp.eq.s32.totalorder %s118, 0
      %s121 = sadd.s32 %s120, 1
      %s122 = scalar_select %p119, %s120, %s121
      %p125 = pneg %p119
      %p126 = scmp.eq.s32.totalorder %s20, 3
      %p127 = por %p125, %p126
      %p128 = scmp.ne.s32.totalorder %s120, %s123
      %p129 = scmp.eq.s32.totalorder %s20, 0
      %p130 = por %p128, %p129
      %p131 = scmp.ne.s32.totalorder %s120, %s123
      %p132 = scmp.eq.s32.totalorder %s25, 3
      %p133 = por %p131, %p132
      %p134 = scmp.ne.s32.totalorder %s123, %s124
      %p135 = scmp.eq.s32.totalorder %s25, 0
      %p136 = por %p134, %p135
      %p137 = scmp.ne.s32.totalorder %s123, %s124
      %p138 = scmp.eq.s32.totalorder %s26, 3
      %p139 = por %p137, %p138
      %p141 = scmp.ne.s32.totalorder %s124, %s140
      %p142 = scmp.eq.s32.totalorder %s26, 0
      %p143 = por %p141, %p142
      %s145 = sadd.s32 %s144, 1
      %p148 = scmp.eq.s32.totalorder %s20, 3
      %p149 = scmp.ne.s32.totalorder %s144, %s146
      %p150 = scmp.eq.s32.totalorder %s20, 0
      %p151 = por %p149, %p150
      %p152 = scmp.ne.s32.totalorder %s144, %s146
      %p153 = scmp.eq.s32.totalorder %s25, 3
      %p154 = por %p152, %p153
      %p155 = scmp.ne.s32.totalorder %s146, %s147
      %p156 = scmp.eq.s32.totalorder %s25, 0
      %p157 = por %p155, %p156
      %p158 = scmp.ne.s32.totalorder %s146, %s147
      %p159 = scmp.eq.s32.totalorder %s26, 3
      %p160 = por %p158, %p159
      %p162 = scmp.ne.s32.totalorder %s147, %s161
      %p163 = scmp.eq.s32.totalorder %s26, 0
      %p164 = por %p162, %p163
      %s165 = ssub.s32 %s27, %s39
      %p166 = scmp.eq.s32.totalorder %s165, 0
      %s168 = sadd.s32 %s167, 1
      %s169 = scalar_select %p166, %s167, %s168
      %p172 = pneg %p166
      %p173 = scmp.eq.s32.totalorder %s20, 3
      %p174 = por %p172, %p173
      %p175 = scmp.ne.s32.totalorder %s167, %s170
      %p176 = scmp.eq.s32.totalorder %s20, 0
      %p177 = por %p175, %p176
      %p178 = scmp.ne.s32.totalorder %s167, %s170
      %p179 = scmp.eq.s32.totalorder %s25, 3
      %p180 = por %p178, %p179
      %p181 = scmp.ne.s32.totalorder %s170, %s171
      %p182 = scmp.eq.s32.totalorder %s25, 0
      %p183 = por %p181, %p182
      %p184 = scmp.ne.s32.totalorder %s170, %s171
      %p185 = scmp.eq.s32.totalorder %s26, 3
      %p186 = por %p184, %p185
      %p188 = scmp.ne.s32.totalorder %s171, %s187
      %p189 = scmp.eq.s32.totalorder %s26, 0
      %p190 = por %p188, %p189
      %p191 = scmp.le.s32.totalorder 1, %s20
      %p192 = scmp.lt.s32.totalorder %s20, 5
      %p193 = pnand %p191, %p192
      %p194 = pneg %p193
      // Predicated region
      $region9: #{tpu_custom_call.1} parent=5 // pred_check
        _
      $region10: #{tpu_custom_call.1} parent=5 // pred_check_branch
        %196 = sbr.rel (%p193) target = $region12
      $region11: #{tpu_custom_call.1} parent=5 // pred_region
        %s197 = ssub.s32 %s20, 1
        // Predicated region
        $region13: #{tpu_custom_call.1} parent=11 // pred_check
          %p198 = pneg %p157
        $region14: #{tpu_custom_call.1} parent=11 // pred_check_branch
          %200 = sbr.rel (%p198) target = $region16
        $region15: #{tpu_custom_call.1} parent=11 // pred_region
          _
        $region16: #{tpu_custom_call.1} parent=11 // pred_fallthru
          _
      $region12: #{tpu_custom_call.1} parent=5 // pred_fallthru
        _
      %p201 = scmp.lt.s32.totalorder %s20, 4
      // Predicated region
      $region17: #{tpu_custom_call.1} parent=5 // pred_check
        %p202 = pneg %p201
      $region18: #{tpu_custom_call.1} parent=5 // pred_check_branch
        %204 = sbr.rel (%p202) target = $region20
      $region19: #{tpu_custom_call.1} parent=5 // pred_region
        // Predicated region
        $region21: #{tpu_custom_call.1} parent=19 // pred_check
          %p205 = pneg %p52
        $region22: #{tpu_custom_call.1} parent=19 // pred_check_branch
          %207 = sbr.rel (%p205) target = $region24
        $region23: #{tpu_custom_call.1} parent=19 // pred_region
          %s208 = sand.u32 %s42, 1
          %s209 = scalar_lea.sflag [#allocation4], %s208
          %s210 = sand.u32 %s42, 1
          %s211 = smul.addr %s210, 8
          %s212 = scalar_lea.vmem [#allocation3], %s211
          %s214 = ssub.s32 128, 128
          %215 = vsyncadd %s209, %s214
          %s216 = smul.addr %s27, 128
          %s217 = scalar_lea.hbm %s0, %s216
          %s219 = sshll.u32 %s212, 4
          %s220 = int_to_ptr.vmem [resolvable:$true] %s219
          %222 = dma.hbm_to_vmem [thread:$0]  %s217, 128, %s220, %s209
        $region24: #{tpu_custom_call.1} parent=19 // pred_fallthru
          _
        // Predicated region
        $region25: #{tpu_custom_call.1} parent=19 // pred_check
          %p223 = pneg %p78
        $region26: #{tpu_custom_call.1} parent=19 // pred_check_branch
          %225 = sbr.rel (%p223) target = $region28
        $region27: #{tpu_custom_call.1} parent=19 // pred_region
          %s226 = sand.u32 %s20, 1
          %s227 = scalar_lea.sflag [#allocation7], %s226
          %s228 = sand.u32 %s68, 1
          %s229 = smul.addr %s228, 16
          %s230 = scalar_lea.vmem [#allocation6], %s229
          %s232 = ssub.s32 256, 256
          %233 = vsyncadd %s227, %s232
          %s234 = smul.addr %s28, 128
          %s235 = scalar_lea.hbm %s1, %s234
          %s236 = sshll.u32 %s230, 4
          %s237 = int_to_ptr.vmem [resolvable:$true] %s236
          %242 = dma.hbm_to_vmem [thread:$0]  %s235, 256, %s237, %s227, 256, 128, 8
        $region28: #{tpu_custom_call.1} parent=19 // pred_fallthru
          _
        // Predicated region
        $region29: #{tpu_custom_call.1} parent=19 // pred_check
          %p243 = pneg %p104
        $region30: #{tpu_custom_call.1} parent=19 // pred_check_branch
          %245 = sbr.rel (%p243) target = $region32
        $region31: #{tpu_custom_call.1} parent=19 // pred_region
          %p246 = scmp.lt.s32.totalorder %s28, 1
          %s247 = scalar_select %p246, %s28, 1
          %s248 = scalar_lea.vmem %s2, %s247
        $region32: #{tpu_custom_call.1} parent=19 // pred_fallthru
          _
        // Predicated region
        $region33: #{tpu_custom_call.1} parent=19 // pred_check
          %p249 = pneg %p130
        $region34: #{tpu_custom_call.1} parent=19 // pred_check_branch
          %251 = sbr.rel (%p249) target = $region36
        $region35: #{tpu_custom_call.1} parent=19 // pred_region
          %s252 = sand.u32 %s20, 1
          %s253 = scalar_lea.sflag [#allocation7], %s252
          %s254 = sand.u32 %s120, 1
          %s255 = smul.addr %s254, 128
          %s256 = scalar_lea.vmem [#allocation8], %s255
          %s257 = smul.u32 16, %s28
          %s259 = ssub.s32 2048, 2048
          %260 = vsyncadd %s253, %s259
          %s261 = smul.addr %s257, 128
          %s262 = scalar_lea.hbm %s3, %s261
          %s263 = sshll.u32 %s256, 4
          %s264 = int_to_ptr.vmem [resolvable:$true] %s263
          %269 = dma.hbm_to_vmem [thread:$0]  %s262, 2048, %s264, %s253, 128, 128, 8
        $region36: #{tpu_custom_call.1} parent=19 // pred_fallthru
          _
      $region20: #{tpu_custom_call.1} parent=5 // pred_fallthru
        _
      %p270 = scmp.le.s32.totalorder 1, %s20
      %p271 = scmp.lt.s32.totalorder %s20, 5
      %p272 = pnand %p270, %p271
      %p273 = pneg %p272
      // Predicated region
      $region37: #{tpu_custom_call.1} parent=5 // pred_check
        _
      $region38: #{tpu_custom_call.1} parent=5 // pred_check_branch
        %275 = sbr.rel (%p272) target = $region40
      $region39: #{tpu_custom_call.1} parent=5 // pred_region
        %s276 = ssub.s32 %s20, 1
        %s277 = sand.u32 %s45, 1
        %s278 = scalar_lea.sflag [#allocation4], %s277
        %s279 = sand.u32 %s45, 1
        %s280 = smul.addr %s279, 8
        %s281 = scalar_lea.vmem [#allocation3], %s280
        // Predicated region
        $region41: #{tpu_custom_call.1} parent=39 // pred_check
          %p282 = pneg %p58
        $region42: #{tpu_custom_call.1} parent=39 // pred_check_branch
          %284 = sbr.rel (%p282) target = $region44
        $region43: #{tpu_custom_call.1} parent=39 // pred_region
          %285 = dma.done %s278, 128
        $region44: #{tpu_custom_call.1} parent=39 // pred_fallthru
          _
        %s286 = sand.u32 %s25, 1
        %s287 = scalar_lea.sflag [#allocation7], %s286
        %s288 = sand.u32 %s71, 1
        %s289 = smul.addr %s288, 16
        %s290 = scalar_lea.vmem [#allocation6], %s289
        // Predicated region
        $region45: #{tpu_custom_call.1} parent=39 // pred_check
          %p291 = pneg %p84
        $region46: #{tpu_custom_call.1} parent=39 // pred_check_branch
          %293 = sbr.rel (%p291) target = $region48
        $region47: #{tpu_custom_call.1} parent=39 // pred_region
          %294 = dma.done %s287, 256
        $region48: #{tpu_custom_call.1} parent=39 // pred_fallthru
          _
        %s295 = sand.u32 %s25, 1
        %s296 = scalar_lea.sflag [#allocation7], %s295
        %s297 = sand.u32 %s123, 1
        %s298 = smul.addr %s297, 128
        %s299 = scalar_lea.vmem [#allocation8], %s298
        // Predicated region
        $region49: #{tpu_custom_call.1} parent=39 // pred_check
          %p300 = pneg %p136
        $region50: #{tpu_custom_call.1} parent=39 // pred_check_branch
          %302 = sbr.rel (%p300) target = $region52
        $region51: #{tpu_custom_call.1} parent=39 // pred_region
          %303 = dma.done %s296, 2048
        $region52: #{tpu_custom_call.1} parent=39 // pred_fallthru
          _
        %s304 = sand.u32 %s45, 1
        %s305 = scalar_lea.sflag [#allocation4], %s304
        %s306 = sand.u32 %s45, 1
        %s307 = smul.addr %s306, 8
        %s308 = scalar_lea.vmem [#allocation3], %s307
        %p309 = pneg %p58
        %p310 = pneg %p55
        %s311 = sand.u32 %s25, 1
        %s312 = scalar_lea.sflag [#allocation7], %s311
        %s313 = sand.u32 %s71, 1
        %s314 = smul.addr %s313, 16
        %s315 = scalar_lea.vmem [#allocation6], %s314
        %p316 = pneg %p84
        %p317 = pneg %p81
        %p318 = scmp.lt.s32.totalorder %s30, 1
        %s319 = scalar_select %p318, %s30, 1
        %s320 = scalar_lea.vmem %s2, %s319
        %p321 = pneg %p110
        %p322 = pneg %p107
        %s323 = sand.u32 %s25, 1
        %s324 = scalar_lea.sflag [#allocation7], %s323
        %s325 = sand.u32 %s123, 1
        %s326 = smul.addr %s325, 128
        %s327 = scalar_lea.vmem [#allocation8], %s326
        %p328 = pneg %p136
        %p329 = pneg %p133
        %p330 = pneg %p157
        %p331 = pneg %p154
        %p332 = pneg %p183
        %p333 = pneg %p180
        %s334 = sand.u32 %s170, 1
        %s335 = scalar_lea.sflag [#allocation5], %s334
        %s336 = sand.u32 %s170, 1
        %s337 = smul.addr %s336, 8
        %s338 = scalar_lea.vmem [#allocation9], %s337
        %p339 = scmp.lt.s32.totalorder %s30, 1
        %s340 = scalar_select %p339, %s30, 1
        %s341 = scalar_lea.vmem %s2, %s340
        %s342 = smul.u32 16, %s30
        %p343 = scmp.eq.s32.totalorder %s30, 0
        // Predicated region
        $region53: #{tpu_custom_call.1} parent=39 // pred_check
          %p344 = pneg %p343
        $region54: #{tpu_custom_call.1} parent=39 // pred_check_branch
          %346 = sbr.rel (%p344) target = $region56
        $region55: #{tpu_custom_call.1} parent=39 // pred_region
          %347 = vst [vmem:[#allocation2] sm:$0xff] 0.0
        $region56: #{tpu_custom_call.1} parent=39 // pred_fallthru
          _
        %v348 = vld [vmem:[%s281] sm:$0xff]
        %v349 = vld [vmem:[%s290] sm:$0xff]
        %v350 = vld [vmem:[%s290 + $0x8] sm:$0xff]
        %v351 = vld [vmem:[%s341] sm:$0x1]
        %v353 = vlaneseq
        %v354 = vshrl.u32 %v353, 7
        %v355 = vsub.s32 0, %v354
        %v356 = vrot.slane %v351, %v355
        %vm358 = vcmask 130048
        %v360 = vsel %vm358, %v348, 0
        %362 = vmatprep.subr.mxu0 0.0
        %363 = vmatpush1.msra.mxu0 %v349
        %364 = vmatprep.subr.mxu0 0.0
        %365 = vmatpush1.msra.mxu0 %v350
        %366 = vmatprep.subr.mxu0 0.0
        %367 = vmatpush1.msra.mxu0 0.0
        %368 = vmatprep.subr.mxu0 0.0
        %369 = vmatpush1.msra.mxu0 0.0
        %370 = vmatprep.subr.mxu0 0.0
        %371 = vmatpush1.msra.mxu0 0.0
        %372 = vmatprep.subr.mxu0 0.0
        %373 = vmatpush1.msra.mxu0 0.0
        %374 = vmatprep.subr.mxu0 0.0
        %375 = vmatpush1.msra.mxu0 0.0
        %376 = vmatprep.subr.mxu0 0.0
        %377 = vmatpush1.msra.mxu0 0.0
        %378 = vmatprep.subr.mxu0 0.0
        %379 = vmatpush1.msra.mxu0 0.0
        %380 = vmatprep.subr.mxu0 0.0
        %381 = vmatpush1.msra.mxu0 0.0
        %382 = vmatprep.subr.mxu0 0.0
        %383 = vmatpush1.msra.mxu0 0.0
        %384 = vmatprep.subr.mxu0 0.0
        %385 = vmatpush1.msra.mxu0 0.0
        %386 = vmatprep.subr.mxu0 0.0
        %387 = vmatpush1.msra.mxu0 0.0
        %388 = vmatprep.subr.mxu0 0.0
        %389 = vmatpush1.msra.mxu0 0.0
        %390 = vmatprep.subr.mxu0 0.0
        %391 = vmatpush1.msra.mxu0 0.0
        %392 = vmatprep.subr.mxu0 0.0
        %393 = vmatpush1.msra.mxu0 0.0
        %394 = vmatprep.subr.mxu0 0.0
        %395 = vmatpush1.msra.mxu0 0.0
        %396 = vmatprep.subr.mxu0 0.0
        %397 = vmatpush1.msra.mxu0 0.0
        %398 = vmatprep.subr.mxu0 0.0
        %399 = vmatpush1.msra.mxu0 0.0
        %400 = vmatprep.subr.mxu0 0.0
        %401 = vmatpush1.msra.mxu0 0.0
        %402 = vmatprep.subr.mxu0 0.0
        %403 = vmatpush1.msra.mxu0 0.0
        %404 = vmatprep.subr.mxu0 0.0
        %405 = vmatpush1.msra.mxu0 0.0
        %406 = vmatprep.subr.mxu0 0.0
        %407 = vmatpush1.msra.mxu0 0.0
        %408 = vmatprep.subr.mxu0 0.0
        %409 = vmatpush1.msra.mxu0 0.0
        %410 = vmatprep.subr.mxu0 0.0
        %411 = vmatpush1.msra.mxu0 0.0
        %412 = vmatprep.subr.mxu0 0.0
        %413 = vmatpush1.msra.mxu0 0.0
        %414 = vmatprep.subr.mxu0 0.0
        %415 = vmatpush1.msra.mxu0 0.0
        %416 = vmatprep.subr.mxu0 0.0
        %417 = vmatpush1.msra.mxu0 0.0
        %418 = vmatprep.subr.mxu0 0.0
        %419 = vmatpush1.msra.mxu0 0.0
        %420 = vmatprep.subr.mxu0 0.0
        %421 = vmatpush1.msra.mxu0 0.0
        %422 = vmatprep.subr.mxu0 0.0
        %423 = vmatpush1.msra.mxu0 0.0
        %424 = vmatprep.subr.mxu0 0.0
        %425 = vmatpush1.msra.mxu0 0.0
        %426 = vmatprep.mubr.f32.mxu0 0.0
        %427 = vmatmul.mubr.f32.gmra.mrb[0].mxu0 %v360
        %v428 = vpop.f32.mrb[0].mxu0
        %v429 = vadd.f32 %v356, %v428
        %v430 = vpop.f32.mrb[0].mxu0
        %431 = vdwg.mxu0
        %v432 = vmax.f32 %v429, 0.0
        %v433 = vld [vmem:[#allocation2] sm:$0xff]
        %v434 = vld [vmem:[%s299] sm:$0xff]
        %v435 = vld [vmem:[%s299 + $0x8] sm:$0xff]
        %v436 = vld [vmem:[%s299 + $0x10] sm:$0xff]
        %v437 = vld [vmem:[%s299 + $0x18] sm:$0xff]
        %v438 = vld [vmem:[%s299 + $0x20] sm:$0xff]
        %v439 = vld [vmem:[%s299 + $0x28] sm:$0xff]
        %v440 = vld [vmem:[%s299 + $0x30] sm:$0xff]
        %v441 = vld [vmem:[%s299 + $0x38] sm:$0xff]
        %v442 = vld [vmem:[%s299 + $0x40] sm:$0xff]
        %v443 = vld [vmem:[%s299 + $0x48] sm:$0xff]
        %v444 = vld [vmem:[%s299 + $0x50] sm:$0xff]
        %v445 = vld [vmem:[%s299 + $0x58] sm:$0xff]
        %v446 = vld [vmem:[%s299 + $0x60] sm:$0xff]
        %v447 = vld [vmem:[%s299 + $0x68] sm:$0xff]
        %v448 = vld [vmem:[%s299 + $0x70] sm:$0xff]
        %v449 = vld [vmem:[%s299 + $0x78] sm:$0xff]
        %450 = vmatprep.subr.mxu0 0.0
        %451 = vmatpush1.msra.mxu0 %v434
        %452 = vmatprep.subr.mxu0 0.0
        %453 = vmatpush1.msra.mxu0 %v435
        %454 = vmatprep.subr.mxu0 0.0
        %455 = vmatpush1.msra.mxu0 %v436
        %456 = vmatprep.subr.mxu0 0.0
        %457 = vmatpush1.msra.mxu0 %v437
        %458 = vmatprep.subr.mxu0 0.0
        %459 = vmatpush1.msra.mxu0 %v438
        %460 = vmatprep.subr.mxu0 0.0
        %461 = vmatpush1.msra.mxu0 %v439
        %462 = vmatprep.subr.mxu0 0.0
        %463 = vmatpush1.msra.mxu0 %v440
        %464 = vmatprep.subr.mxu0 0.0
        %465 = vmatpush1.msra.mxu0 %v441
        %466 = vmatprep.subr.mxu0 0.0
        %467 = vmatpush1.msra.mxu0 %v442
        %468 = vmatprep.subr.mxu0 0.0
        %469 = vmatpush1.msra.mxu0 %v443
        %470 = vmatprep.subr.mxu0 0.0
        %471 = vmatpush1.msra.mxu0 %v444
        %472 = vmatprep.subr.mxu0 0.0
        %473 = vmatpush1.msra.mxu0 %v445
        %474 = vmatprep.subr.mxu0 0.0
        %475 = vmatpush1.msra.mxu0 %v446
        %476 = vmatprep.subr.mxu0 0.0
        %477 = vmatpush1.msra.mxu0 %v447
        %478 = vmatprep.subr.mxu0 0.0
        %479 = vmatpush1.msra.mxu0 %v448
        %480 = vmatprep.subr.mxu0 0.0
        %481 = vmatpush1.msra.mxu0 %v449
        %482 = vmatprep.subr.mxu0 0.0
        %483 = vmatpush1.msra.mxu0 0.0
        %484 = vmatprep.subr.mxu0 0.0
        %485 = vmatpush1.msra.mxu0 0.0
        %486 = vmatprep.subr.mxu0 0.0
        %487 = vmatpush1.msra.mxu0 0.0
        %488 = vmatprep.subr.mxu0 0.0
        %489 = vmatpush1.msra.mxu0 0.0
        %490 = vmatprep.subr.mxu0 0.0
        %491 = vmatpush1.msra.mxu0 0.0
        %492 = vmatprep.subr.mxu0 0.0
        %493 = vmatpush1.msra.mxu0 0.0
        %494 = vmatprep.subr.mxu0 0.0
        %495 = vmatpush1.msra.mxu0 0.0
        %496 = vmatprep.subr.mxu0 0.0
        %497 = vmatpush1.msra.mxu0 0.0
        %498 = vmatprep.subr.mxu0 0.0
        %499 = vmatpush1.msra.mxu0 0.0
        %500 = vmatprep.subr.mxu0 0.0
        %501 = vmatpush1.msra.mxu0 0.0
        %502 = vmatprep.subr.mxu0 0.0
        %503 = vmatpush1.msra.mxu0 0.0
        %504 = vmatprep.subr.mxu0 0.0
        %505 = vmatpush1.msra.mxu0 0.0
        %506 = vmatprep.subr.mxu0 0.0
        %507 = vmatpush1.msra.mxu0 0.0
        %508 = vmatprep.subr.mxu0 0.0
        %509 = vmatpush1.msra.mxu0 0.0
        %510 = vmatprep.subr.mxu0 0.0
        %511 = vmatpush1.msra.mxu0 0.0
        %512 = vmatprep.subr.mxu0 0.0
        %513 = vmatpush1.msra.mxu0 0.0
        %514 = vmatprep.mubr.f32.mxu0 0.0
        %515 = vmatmul.mubr.f32.gmra.mrb[0].mxu0 %v432
        %v516 = vpop.f32.mrb[0].mxu0
        %v517 = vadd.f32 0.0, %v516
        %v518 = vpop.f32.mrb[0].mxu0
        %519 = vdwg.mxu0
        %v520 = vadd.f32 %v433, %v517
        %521 = vst [vmem:[#allocation2] sm:$0xff] %v520
        %p522 = scmp.eq.s32.totalorder %s30, 1
        // Predicated region
        $region57: #{tpu_custom_call.1} parent=39 // pred_check
          %p523 = pneg %p522
        $region58: #{tpu_custom_call.1} parent=39 // pred_check_branch
          %525 = sbr.rel (%p523) target = $region60
        $region59: #{tpu_custom_call.1} parent=39 // pred_region
          %v526 = vld [vmem:[#allocation2] sm:$0xff]
          %v527 = vld [vmem:[%s4] sm:$0x1]
          %v529 = vlaneseq
          %v530 = vshrl.u32 %v529, 7
          %v531 = vsub.s32 0, %v530
          %v532 = vrot.slane %v527, %v531
          %v534 = vadd.f32 %v526, %v532
          %535 = vst [vmem:[%s338] sm:$0xff] %v534
        $region60: #{tpu_custom_call.1} parent=39 // pred_fallthru
          _
        %s536 = sand.u32 %s170, 1
        %s537 = scalar_lea.sflag [#allocation5], %s536
        %s538 = sand.u32 %s170, 1
        %s539 = smul.addr %s538, 8
        %s540 = scalar_lea.vmem [#allocation9], %s539
        // Predicated region
        $region61: #{tpu_custom_call.1} parent=39 // pred_check
          %p541 = pneg %p180
        $region62: #{tpu_custom_call.1} parent=39 // pred_check_branch
          %543 = sbr.rel (%p541) target = $region64
        $region63: #{tpu_custom_call.1} parent=39 // pred_region
          %s545 = ssub.s32 128, 128
          %546 = vsyncadd %s537, %s545
          %s547 = smul.addr %s29, 128
          %s548 = scalar_lea.hbm %s5, %s547
          %s550 = sshll.u32 %s540, 4
          %s551 = int_to_ptr.vmem [resolvable:$true] %s550
          %553 = dma.vmem_to_hbm [thread:$0]  %s551, 128, %s548, %s537
        $region64: #{tpu_custom_call.1} parent=39 // pred_fallthru
          _
      $region40: #{tpu_custom_call.1} parent=5 // pred_fallthru
        _
      %p554 = scmp.le.s32.totalorder 2, %s20
      // Predicated region
      $region65: #{tpu_custom_call.1} parent=5 // pred_check
        %p555 = pneg %p554
      $region66: #{tpu_custom_call.1} parent=5 // pred_check_branch
        %557 = sbr.rel (%p555) target = $region68
      $region67: #{tpu_custom_call.1} parent=5 // pred_region
        %s558 = ssub.s32 %s20, 2
        // Predicated region
        $region69: #{tpu_custom_call.1} parent=67 // pred_check
          %p559 = pneg %p186
        $region70: #{tpu_custom_call.1} parent=67 // pred_check_branch
          %561 = sbr.rel (%p559) target = $region72
        $region71: #{tpu_custom_call.1} parent=67 // pred_region
          %s562 = sand.u32 %s171, 1
          %s563 = scalar_lea.sflag [#allocation5], %s562
          %s564 = sand.u32 %s171, 1
          %s565 = smul.addr %s564, 8
          %s566 = scalar_lea.vmem [#allocation9], %s565
          %567 = dma.done %s563, 128
        $region72: #{tpu_custom_call.1} parent=67 // pred_fallthru
          _
      $region68: #{tpu_custom_call.1} parent=5 // pred_fallthru
        _
    $region6: #{tpu_custom_call.1} parent=1 // loop_footer
      %s24 = sadd.s32 1, %s20
    $region7: #{tpu_custom_call.1} parent=1 // loop_footer_branch
      %19 = sbr.rel target = $region3
    $region8: #{tpu_custom_call.1} parent=1 // loop_exit
      _
    %568 = vsyncpa [#allocation4], 1
    %s569 = scalar_lea.sflag [#allocation4], 1
    %570 = vsyncpa %s569, 1
    %571 = vsyncpa [#allocation7], 1
    %s572 = scalar_lea.sflag [#allocation7], 1
    %573 = vsyncpa %s572, 1
    %574 = vsyncpa [#allocation5], 1
    %s575 = scalar_lea.sflag [#allocation5], 1
    %576 = vsyncpa %s575, 1

</llo_original>
